<compile_context>
chip_gen: v7x
topology: tpu7x:2x2x1
jax: 0.10.0
libtpu: 0.0.40
codegen_flags: <defaults>
</compile_context>

<pallas_src>
import jax
import jax.numpy as jnp
from jax.experimental import pallas as pl
from jax.experimental.pallas import tpu as pltpu


IN_FEATURES = 4
HIDDEN = 10

LANE = 128
# Conservative per-lane-column VMEM estimate for one grid step (bytes):
#   x block   [4,T] -> sublane-padded [8,T], x2 buffers   = 64*T
#   out block [1,T] -> sublane-padded [8,T], x2 buffers   = 64*T
#   f32 temporaries (h, h*w2, ...) ~ [10,T]-sized slabs   ~ 192*T
_VMEM_BYTES_PER_COL = 320
_MAX_TILE = 256 * 1024             # review target upper end for tile_b
_FALLBACK_VMEM = 64 * 1024 * 1024  # v7x per-TC VMEM = smallest of v5e/v6e/v7x


def ffnn_kernel(x_ref, w1_ref, b1_ref, w2_ref, b2_ref, o_ref):
    # x_ref : [4, T]   batch tile on lanes (feature-major)
    # w1_ref: [10, 4]  fc1.weight (PyTorch layout), resident
    # b1_ref: [10, 1]  fc1.bias, resident
    # w2_ref: [10, 1]  fc2.weight^T, resident
    # b2_ref: [1, 1]   fc2.bias scalar, SMEM
    # o_ref : [1, T]
    h = jnp.dot(w1_ref[...], x_ref[...],
                preferred_element_type=jnp.float32)          # MXU: [10, T]
    h = jnp.maximum(h + b1_ref[...], 0.0)                    # bias + ReLU (VPU)
    # Layer 2 (10 -> 1) as a VPU multiply + sublane reduction.
    o = jnp.sum(h * w2_ref[...], axis=0, keepdims=True)      # [1, T]
    o_ref[...] = o + b2_ref[0, 0]


def _round_up(v, m):
    return ((v + m - 1) // m) * m


def _vmem_capacity_bytes():
    try:
        return int(pltpu.get_tpu_info().vmem_capacity_bytes)
    except Exception:
        return _FALLBACK_VMEM


def _pick_tile(b_aligned, tile_b):
    """Pick a lane-aligned batch tile sized against this device's VMEM."""
    if tile_b is None:
        budget = _vmem_capacity_bytes() // 3          # leave pipelining headroom
        tile_b = max(LANE, (budget // _VMEM_BYTES_PER_COL) // LANE * LANE)
        tile_b = min(tile_b, _MAX_TILE)
    tile = min(_round_up(tile_b, LANE), b_aligned)
    # Keep >=2 grid steps when the batch allows it so dimension_semantics
    # ("parallel",) can shard the batch across both TensorCores (v7x megacore).
    if b_aligned >= 2 * LANE:
        tile = min(tile, _round_up(pl.cdiv(b_aligned, 2), LANE))
    return tile


def ffnn_forward_feature_major(x_t, w1, b1, w2, b2, *, tile_b=None):
    """Core entry point. x_t: [4, B] feature-major f32 -> [1, B] f32.

    Zero extra HBM copies when B is already a multiple of the chosen batch tile.
    """
    _, B = x_t.shape
    b_aligned = _round_up(max(B, 1), LANE)
    tile = _pick_tile(b_aligned, tile_b)
    bp = _round_up(B, tile)
    if bp != B:
        # Single fused pad copy (padded columns compute garbage that is sliced off).
        x_t = jnp.pad(x_t, ((0, 0), (0, bp - B)))

    vmem_needed = _VMEM_BYTES_PER_COL * tile
    vmem_limit = int(min(_vmem_capacity_bytes() * 3 // 4,
                         max(32 * 1024 * 1024, 2 * vmem_needed)))

    out_t = pl.pallas_call(
        ffnn_kernel,
        out_shape=jax.ShapeDtypeStruct((1, bp), jnp.float32),
        grid=(bp // tile,),
        in_specs=[
            pl.BlockSpec((IN_FEATURES, tile), lambda i: (0, i)),    # x tile (streamed)
            pl.BlockSpec((HIDDEN, IN_FEATURES), lambda i: (0, 0)),  # w1 resident
            pl.BlockSpec((HIDDEN, 1), lambda i: (0, 0)),            # b1 resident
            pl.BlockSpec((HIDDEN, 1), lambda i: (0, 0)),            # w2 resident
            pl.BlockSpec(memory_space=pltpu.SMEM),                  # b2 scalar
        ],
        out_specs=pl.BlockSpec((1, tile), lambda i: (0, i)),
        compiler_params=pltpu.CompilerParams(
            dimension_semantics=("parallel",),
            vmem_limit_bytes=vmem_limit),
        cost_estimate=pl.CostEstimate(
            flops=120 * bp,                                  # ~2*4*10 + 10 + 2*10 per col
            transcendentals=0,
            bytes_accessed=(IN_FEATURES + 1) * 4 * bp),      # 16 B in + 4 B out per col
    )(x_t, w1, b1, w2, b2)

    return out_t[:, :B]


def ffnn_forward(x, w1, b1, w2, b2, *, tile_b=None):
    """x: [B, 4] f32 -> [B, 1] f32 (PyTorch FFNN.forward semantics).

    Pure layout plumbing: one fused transpose(/pad) copy to feature-major.  Callers
    that already hold feature-major [4, B] data should call
    ffnn_forward_feature_major directly and skip that copy entirely.
    """
    out_t = ffnn_forward_feature_major(x.T, w1, b1, w2, b2, tile_b=tile_b)
    return out_t.T                                           # [B, 1]


def init_params(key):
    """Deterministic init mimicking PyTorch nn.Linear (uniform +-1/sqrt(fan_in))."""
    k1, k2, k3, k4 = jax.random.split(key, 4)
    bound1 = 1.0 / jnp.sqrt(4.0)
    bound2 = 1.0 / jnp.sqrt(10.0)
    w1 = jax.random.uniform(k1, (HIDDEN, IN_FEATURES), jnp.float32, -bound1, bound1)
    b1 = jax.random.uniform(k2, (HIDDEN, 1), jnp.float32, -bound1, bound1)
    w2 = jax.random.uniform(k3, (HIDDEN, 1), jnp.float32, -bound2, bound2)
    b2 = jax.random.uniform(k4, (1, 1), jnp.float32, -bound2, bound2)
    return w1, b1, w2, b2


if __name__ == "__main__":
    key = jax.random.PRNGKey(0)
    kx, kp = jax.random.split(key)

    B = 12                                   # small batch consistent with the module
    x = jax.random.normal(kx, (B, IN_FEATURES), jnp.float32)
    w1, b1, w2, b2 = init_params(kp)

    out = ffnn_forward(x, w1, b1, w2, b2)
    out = jax.block_until_ready(out)

    # Reference in plain JAX: relu(x @ W1^T + b1^T) @ W2 + b2  (PyTorch semantics)
    ref = jnp.maximum(x @ w1.T + b1.T, 0.0) @ w2 + b2
    assert out.shape == (B, 1)
    assert jnp.allclose(out, ref, atol=1e-5, rtol=1e-5)

    print("KERNEL_OK")
</pallas_src>

<mosaic_0001>
module attributes {stable_mosaic.version = 11 : i64} {
  func.func @ffnn_kernel(%arg0: i32, %arg1: memref<4x128xf32, #tpu.memory_space<vmem>>, %arg2: memref<10x4xf32, #tpu.memory_space<vmem>>, %arg3: memref<10x1xf32, #tpu.memory_space<vmem>>, %arg4: memref<10x1xf32, #tpu.memory_space<vmem>>, %arg5: memref<1x1xf32, #tpu.memory_space<smem>>, %arg6: memref<1x128xf32, #tpu.memory_space<vmem>>) attributes {dimension_semantics = [#tpu.dimension_semantics<parallel>], iteration_bounds = array<i64: 1>, scalar_prefetch = 0 : i64, scratch_operands = 0 : i64, tpu.core_type = #tpu.core_type<tc>, window_params = [{transform_indices = @transform_0, window_bounds = array<i64: 4, 128>}, {pipeline_mode = #tpu.pipeline_mode<synchronous>, transform_indices = @transform_1, window_bounds = array<i64: 10, 4>}, {pipeline_mode = #tpu.pipeline_mode<synchronous>, transform_indices = @transform_2, window_bounds = array<i64: 10, 1>}, {pipeline_mode = #tpu.pipeline_mode<synchronous>, transform_indices = @transform_3, window_bounds = array<i64: 10, 1>}, {transform_indices = @transform_4, window_bounds = array<i64: 1, 1>}, {transform_indices = @transform_5, window_bounds = array<i64: 1, 128>}]} {
    %c0 = arith.constant 0 : index
    %c0_0 = arith.constant 0 : index
    %0 = vector.load %arg2[%c0, %c0_0] : memref<10x4xf32, #tpu.memory_space<vmem>>, vector<10x4xf32>
    %c0_1 = arith.constant 0 : index
    %c0_2 = arith.constant 0 : index
    %1 = vector.load %arg1[%c0_1, %c0_2] : memref<4x128xf32, #tpu.memory_space<vmem>>, vector<4x128xf32>
    %cst = arith.constant dense<0.000000e+00> : vector<10x128xf32>
    %2 = tpu.matmul %0, %1, %cst {dimension_numbers = #tpu.dot_dimension_numbers<[1], [0], [0], [1], [0, 0, 1, 1], [], []>} : vector<10x4xf32>, vector<4x128xf32>, vector<10x128xf32> -> vector<10x128xf32>
    %c0_3 = arith.constant 0 : index
    %c0_4 = arith.constant 0 : index
    %3 = vector.load %arg3[%c0_3, %c0_4] : memref<10x1xf32, #tpu.memory_space<vmem>>, vector<10x1xf32>
    %4 = vector.broadcast %3 : vector<10x1xf32> to vector<10x128xf32>
    %5 = arith.addf %2, %4 : vector<10x128xf32>
    %cst_5 = arith.constant 0.000000e+00 : f32
    %6 = vector.broadcast %cst_5 : f32 to vector<10x128xf32>
    %7 = arith.maximumf %5, %6 : vector<10x128xf32>
    %c0_6 = arith.constant 0 : index
    %c0_7 = arith.constant 0 : index
    %8 = vector.load %arg4[%c0_6, %c0_7] : memref<10x1xf32, #tpu.memory_space<vmem>>, vector<10x1xf32>
    %9 = vector.broadcast %8 : vector<10x1xf32> to vector<10x128xf32>
    %10 = arith.mulf %7, %9 : vector<10x128xf32>
    %cst_8 = arith.constant dense<0.000000e+00> : vector<128xf32>
    %11 = vector.multi_reduction <add>, %10, %cst_8 [0] : vector<10x128xf32> to vector<128xf32>
    %12 = vector.shape_cast %11 : vector<128xf32> to vector<1x128xf32>
    %c0_9 = arith.constant 0 : index
    %c0_10 = arith.constant 0 : index
    %13 = memref.load %arg5[%c0_9, %c0_10] : memref<1x1xf32, #tpu.memory_space<smem>>
    %14 = vector.broadcast %13 : f32 to vector<1x128xf32>
    %15 = arith.addf %12, %14 : vector<1x128xf32>
    %c0_11 = arith.constant 0 : index
    %c0_12 = arith.constant 0 : index
    %16 = vector.load %arg6[%c0_11, %c0_12] : memref<1x128xf32, #tpu.memory_space<vmem>>, vector<1x128xf32>
    tpu.vector_store %arg6[%c0_11, %c0_12], %15 {strides = array<i32>} : memref<1x128xf32, #tpu.memory_space<vmem>>, vector<1x128xf32>,
    return
  }
  func.func @transform_0(%arg0: i32) -> (i32, i32) {
    %c0_i32 = arith.constant 0 : i32
    %c0_i32_0 = arith.constant 0 : i32
    return %c0_i32, %arg0 : i32, i32
  }
  func.func @transform_1(%arg0: i32) -> (i32, i32) {
    %c0_i32 = arith.constant 0 : i32
    %c0_i32_0 = arith.constant 0 : i32
    %c0_i32_1 = arith.constant 0 : i32
    return %c0_i32, %c0_i32_0 : i32, i32
  }
  func.func @transform_2(%arg0: i32) -> (i32, i32) {
    %c0_i32 = arith.constant 0 : i32
    %c0_i32_0 = arith.constant 0 : i32
    %c0_i32_1 = arith.constant 0 : i32
    return %c0_i32, %c0_i32_0 : i32, i32
  }
  func.func @transform_3(%arg0: i32) -> (i32, i32) {
    %c0_i32 = arith.constant 0 : i32
    %c0_i32_0 = arith.constant 0 : i32
    %c0_i32_1 = arith.constant 0 : i32
    return %c0_i32, %c0_i32_0 : i32, i32
  }
  func.func @transform_4(%arg0: i32) -> (i32, i32) {
    %c0_i32 = arith.constant 0 : i32
    %c0_i32_0 = arith.constant 0 : i32
    %c0_i32_1 = arith.constant 0 : i32
    return %c0_i32, %c0_i32_0 : i32, i32
  }
  func.func @transform_5(%arg0: i32) -> (i32, i32) {
    %c0_i32 = arith.constant 0 : i32
    %c0_i32_0 = arith.constant 0 : i32
    return %c0_i32, %arg0 : i32, i32
  }
}

</mosaic_0001>

<llo_original>
// kernel: tpu_custom_call.1
$region0: #{tpu_custom_call.1}
  #allocation0 [shape = 'u32[]', space=smem, size = 0x4, offset = 0x4, fixed_abs, tag = 'smem constant byte address 0x4 - core index']
  #allocation1 [shape = 'u32[144,128]{1,0:T(1,128)}', space=vmem, size = 0x12000, scoped, tag = 'internal scratch']
  #allocation2 [shape = 'f32[1,1]{1,0:T(1,128)S(6)}', space=smem, size = 0x200, scoped, tag = 'scoped memory for tpu_custom_call.1']
  %s0 = inlined_call_operand.vmem [shape: f32[4,128], index: 0, kind: input, shape index: {}]
  %s1 = inlined_call_operand.vmem [shape: f32[10,4], index: 1, kind: input, shape index: {}]
  %s2 = inlined_call_operand.vmem [shape: f32[10,1], index: 2, kind: input, shape index: {}]
  %s3 = inlined_call_operand.vmem [shape: f32[10,1], index: 3, kind: input, shape index: {}]
  %s4 = inlined_call_operand.<no memory space> [shape: f32[1,1], index: 4, kind: input, shape index: {}]
  %s5 = inlined_call_operand.hbm [shape: f32[1,128], index: 5, kind: output, shape index: {}]
  %s6 = sld [smem:[#allocation0]]
  $region30: #{tpu_custom_call.1} parent=0
    _
  %s8 = ssub.s32 1, %s6
  %s9 = scalar_select 0, %s8, %s6
  %10 = sst [smem:[#allocation2]] %s4
  $region1: #{tpu_custom_call.1} parent=0
    #allocation3 [shape = 'u8[512]{0}', space=vmem, size = 0x400, scoped, tag = 'output window, operand 0, single buffered']
    #allocation4 [shape = 's32[1]{0}', space=sflag, size = 0x4, scoped, tag = 'scoped memory for tpu_custom_call.1']
    %11 = vsyncpa [#allocation4], 0
    // Predicated region
    $region2: #{tpu_custom_call.1} parent=1 // pred_check
      _
    $region3: #{tpu_custom_call.1} parent=1 // pred_check_branch
      %13 = sbr.rel (0) target = $region5
    $region4: #{tpu_custom_call.1} parent=1 // pred_region
      _
    $region5: #{tpu_custom_call.1} parent=1 // pred_fallthru
      _
    // Predicated region
    $region6: #{tpu_custom_call.1} parent=1 // pred_check
      _
    $region7: #{tpu_custom_call.1} parent=1 // pred_check_branch
      %15 = sbr.rel (0) target = $region9
    $region8: #{tpu_custom_call.1} parent=1 // pred_region
      _
    $region9: #{tpu_custom_call.1} parent=1 // pred_fallthru
      _
    // Predicated region
    $region10: #{tpu_custom_call.1} parent=1 // pred_check
      _
    $region11: #{tpu_custom_call.1} parent=1 // pred_check_branch
      %17 = sbr.rel (0) target = $region13
    $region12: #{tpu_custom_call.1} parent=1 // pred_region
      _
    $region13: #{tpu_custom_call.1} parent=1 // pred_fallthru
      _
    // Predicated region
    $region14: #{tpu_custom_call.1} parent=1 // pred_check
      _
    $region15: #{tpu_custom_call.1} parent=1 // pred_check_branch
      %19 = sbr.rel (0) target = $region17
    $region16: #{tpu_custom_call.1} parent=1 // pred_region
      _
    $region17: #{tpu_custom_call.1} parent=1 // pred_fallthru
      _
    // Predicated region
    $region18: #{tpu_custom_call.1} parent=1 // pred_check
      _
    $region19: #{tpu_custom_call.1} parent=1 // pred_check_branch
      %21 = sbr.rel (0) target = $region21
    $region20: #{tpu_custom_call.1} parent=1 // pred_region
      _
    $region21: #{tpu_custom_call.1} parent=1 // pred_fallthru
      _
    %v22 = vld [vmem:[%s1] sm:$0xff]
    %v23 = vld [vmem:[%s1 + $0x8] sm:$0x3]
    %v24 = vld [vmem:[%s0] sm:$0xf]
    %v25 = vld [vmem:[%s2] sm:$0xff]
    %v26 = vld [vmem:[%s2 + $0x8] sm:$0x3]
    %28 = vset.pattern.permute.xlu0 0
    %29 = vperm.xlu0 %28, %v25
    %v30 = vpop.permute.xlu0 %29
    %33 = vset.pattern.permute.xlu0 0
    %34 = vperm.xlu0 %33, %v26
    %v35 = vpop.permute.xlu0 %34
    %vm37 = vcmask 31744
    %v39 = vsel %vm37, %v22, 0
    %v42 = vsel %vm37, %v23, 0
    %vm44 = vcmask 1043456
    %v46 = vsel %vm44, %v24, 0
    %48 = vmatprep.subr.mxu0 0.0
    %49 = vmatpush1.msra.mxu0 %v46
    %50 = vmatprep.subr.mxu0 0.0
    %51 = vmatpush1.msra.mxu0 0.0
    %52 = vmatprep.subr.mxu0 0.0
    %53 = vmatpush1.msra.mxu0 0.0
    %54 = vmatprep.subr.mxu0 0.0
    %55 = vmatpush1.msra.mxu0 0.0
    %56 = vmatprep.subr.mxu0 0.0
    %57 = vmatpush1.msra.mxu0 0.0
    %58 = vmatprep.subr.mxu0 0.0
    %59 = vmatpush1.msra.mxu0 0.0
    %60 = vmatprep.subr.mxu0 0.0
    %61 = vmatpush1.msra.mxu0 0.0
    %62 = vmatprep.subr.mxu0 0.0
    %63 = vmatpush1.msra.mxu0 0.0
    %64 = vmatprep.subr.mxu0 0.0
    %65 = vmatpush1.msra.mxu0 0.0
    %66 = vmatprep.subr.mxu0 0.0
    %67 = vmatpush1.msra.mxu0 0.0
    %68 = vmatprep.subr.mxu0 0.0
    %69 = vmatpush1.msra.mxu0 0.0
    %70 = vmatprep.subr.mxu0 0.0
    %71 = vmatpush1.msra.mxu0 0.0
    %72 = vmatprep.subr.mxu0 0.0
    %73 = vmatpush1.msra.mxu0 0.0
    %74 = vmatprep.subr.mxu0 0.0
    %75 = vmatpush1.msra.mxu0 0.0
    %76 = vmatprep.subr.mxu0 0.0
    %77 = vmatpush1.msra.mxu0 0.0
    %78 = vmatprep.subr.mxu0 0.0
    %79 = vmatpush1.msra.mxu0 0.0
    %80 = vmatprep.subr.mxu0 0.0
    %81 = vmatpush1.msra.mxu0 0.0
    %82 = vmatprep.subr.mxu0 0.0
    %83 = vmatpush1.msra.mxu0 0.0
    %84 = vmatprep.subr.mxu0 0.0
    %85 = vmatpush1.msra.mxu0 0.0
    %86 = vmatprep.subr.mxu0 0.0
    %87 = vmatpush1.msra.mxu0 0.0
    %88 = vmatprep.subr.mxu0 0.0
    %89 = vmatpush1.msra.mxu0 0.0
    %90 = vmatprep.subr.mxu0 0.0
    %91 = vmatpush1.msra.mxu0 0.0
    %92 = vmatprep.subr.mxu0 0.0
    %93 = vmatpush1.msra.mxu0 0.0
    %94 = vmatprep.subr.mxu0 0.0
    %95 = vmatpush1.msra.mxu0 0.0
    %96 = vmatprep.subr.mxu0 0.0
    %97 = vmatpush1.msra.mxu0 0.0
    %98 = vmatprep.subr.mxu0 0.0
    %99 = vmatpush1.msra.mxu0 0.0
    %100 = vmatprep.subr.mxu0 0.0
    %101 = vmatpush1.msra.mxu0 0.0
    %102 = vmatprep.subr.mxu0 0.0
    %103 = vmatpush1.msra.mxu0 0.0
    %104 = vmatprep.subr.mxu0 0.0
    %105 = vmatpush1.msra.mxu0 0.0
    %106 = vmatprep.subr.mxu0 0.0
    %107 = vmatpush1.msra.mxu0 0.0
    %108 = vmatprep.subr.mxu0 0.0
    %109 = vmatpush1.msra.mxu0 0.0
    %110 = vmatprep.subr.mxu0 0.0
    %111 = vmatpush1.msra.mxu0 0.0
    %112 = vmatprep.mubr.f32.mxu0 0.0
    %113 = vmatmul.mubr.f32.gmra.mrb[0].mxu0 %v39
    %v114 = vpop.f32.mrb[0].mxu0
    %v115 = vadd.f32 %v30, %v114
    %v116 = vpop.f32.mrb[0].mxu0
    %117 = vmatprep.mubr.f32.mxu0 0.0
    %118 = vmatmul.mubr.f32.gmra.mrb[0].mxu0 %v42
    %v119 = vpop.f32.mrb[0].mxu0
    %v120 = vadd.f32 %v35, %v119
    %v121 = vpop.f32.mrb[0].mxu0
    %122 = vdwg.mxu0
    %v123 = vmax.f32 %v115, 0.0
    %v124 = vmax.f32 %v120, 0.0
    %v125 = vld [vmem:[%s3] sm:$0xff]
    %v126 = vld [vmem:[%s3 + $0x8] sm:$0x3]
    %128 = vset.pattern.permute.xlu0 0
    %129 = vperm.xlu0 %128, %v125
    %v130 = vpop.permute.xlu0 %129
    %133 = vset.pattern.permute.xlu0 0
    %134 = vperm.xlu0 %133, %v126
    %v135 = vpop.permute.xlu0 %134
    %v137 = vmul.f32 %v123, %v130
    %v138 = vmul.f32 %v124, %v135
    %vm139 = vcmask 1041408
    %v140 = vsel %vm139, %v138, 0.0
    %v141 = vadd.f32 %v137, %v140
    %v142 = vrot.slane %v141, 4
    %v143 = vadd.f32 %v141, %v142
    %v144 = vrot.slane %v143, 2
    %v145 = vadd.f32 %v143, %v144
    %v146 = vrot.slane %v145, 1
    %v147 = vadd.f32 %v145, %v146
    %s148 = sld [smem:[#allocation2]]
    %v149 = vstv %s148
    %v150 = vadd.f32 %v147, %v149
    %151 = vst [vmem:[#allocation3] sm:$0x1] %v150
    // Predicated region
    $region22: #{tpu_custom_call.1} parent=1 // pred_check
      _
    $region23: #{tpu_custom_call.1} parent=1 // pred_check_branch
      %153 = sbr.rel (0) target = $region25
    $region24: #{tpu_custom_call.1} parent=1 // pred_region
      %s155 = ssub.s32 16, 16
      %156 = vsyncadd [#allocation4], %s155
      %s158 = sshll.u32 [#allocation3], 4
      %s159 = int_to_ptr.vmem [resolvable:$true] %s158
      %161 = dma.vmem_to_hbm [thread:$0]  %s159, 16, %s5, [#allocation4]
    $region25: #{tpu_custom_call.1} parent=1 // pred_fallthru
      _
    // Predicated region
    $region26: #{tpu_custom_call.1} parent=1 // pred_check
      _
    $region27: #{tpu_custom_call.1} parent=1 // pred_check_branch
      %163 = sbr.rel (0) target = $region29
    $region28: #{tpu_custom_call.1} parent=1 // pred_region
      %164 = dma.done [#allocation4], 16
    $region29: #{tpu_custom_call.1} parent=1 // pred_fallthru
      _
    %165 = vsyncpa [#allocation4], 1

</llo_original>
